<compile_context>
chip_gen: v7x
topology: tpu7x:2x2x1
jax: 0.10.0
libtpu: 0.0.40
codegen_flags: <defaults>
</compile_context>

<pallas_src>
import functools
import math

import jax
import jax.numpy as jnp
from jax.experimental import pallas as pl
from jax.experimental.pallas import tpu as pltpu

D_MODEL = 32
MAX_LEN = 850
DROPOUT_P = 0.4

_LANE = 128
_MAX_BLOCK_BYTES = 2 * 1024 * 1024  # per-buffer block cap; safe for v7x 64 MiB VMEM


def build_pe_buffer(d_model: int, max_len: int) -> jnp.ndarray:
    """Deterministic 'pe' buffer exactly as the module __init__ builds it."""
    half = d_model // 2
    lin01 = jnp.linspace(0.0, 1.0, max_len, dtype=jnp.float32)[:, None]
    lin10 = jnp.linspace(1.0, 0.0, max_len, dtype=jnp.float32)[:, None]
    pe_start = jnp.repeat(lin01, half, axis=-1)
    pe_end = jnp.repeat(lin10, half, axis=-1)
    return jnp.concatenate([pe_start, pe_end], axis=-1)  # (max_len, d_model)


def _pe_add_kernel(x_ref, pe_ref, o_ref):
    # x_ref: (tile_r, C); pe_ref: (1, C) resident row -> sublane broadcast add.
    o_ref[...] = (x_ref[...] + pe_ref[...]).astype(o_ref.dtype)


def _pe_add_dropout_kernel(x_ref, pe_ref, u_ref, o_ref, *, p: float):
    scale = 1.0 / (1.0 - p)
    val = x_ref[...] + pe_ref[...]
    keep = u_ref[...] >= jnp.float32(p)
    o_ref[...] = jnp.where(keep, val * scale, jnp.zeros_like(val)).astype(o_ref.dtype)


def positional_encoding_forward(x, pe, *, p: float = DROPOUT_P,
                                training: bool = False, rng_key=None):
    """x: [n0, n1, d_model] (PyTorch docstring: [seq_len, batch, d_model])."""
    n0, n1, d = x.shape
    row = n1 * d
    pe_row = pe[:n1].reshape(row)  # mirrors self.pe[:, :x.size(1)], flattened

    # --- lane-dense 2D view: last dim a multiple of 128 when it divides evenly.
    total = n0 * row
    lane_c = (_LANE * row) // math.gcd(_LANE, row)  # lcm(row, 128)
    if total % lane_c == 0:
        C = lane_c
    else:
        C = row  # fallback: (n0, n1*d) rows — last dim equals full array dim
    R = total // C
    reps = C // row

    x2 = x.reshape(R, C)
    pe_tile = jnp.tile(pe_row, reps).reshape(1, C).astype(x.dtype)

    # --- block sizing: one big block if it fits, else lane-dense tiles of
    # sublane-aligned height (multiple of 8).
    bytes_per_row = C * x.dtype.itemsize
    if R * bytes_per_row <= _MAX_BLOCK_BYTES:
        tile_r = R
    else:
        tile_r = max(8, (_MAX_BLOCK_BYTES // bytes_per_row) // 8 * 8)
    grid = (pl.cdiv(R, tile_r),)

    x_spec = pl.BlockSpec((tile_r, C), lambda i: (i, 0))
    pe_spec = pl.BlockSpec((1, C), lambda i: (0, 0))  # resident across the grid
    out_spec = pl.BlockSpec((tile_r, C), lambda i: (i, 0))

    apply_dropout = training and p > 0.0
    if apply_dropout:
        if rng_key is None:
            rng_key = jax.random.PRNGKey(0)
        u = jax.random.uniform(rng_key, (R, C), dtype=jnp.float32)
        kernel = functools.partial(_pe_add_dropout_kernel, p=p)
        in_specs = [x_spec, pe_spec, pl.BlockSpec((tile_r, C), lambda i: (i, 0))]
        operands = (x2, pe_tile, u)
        n_io_arrays = 4
        flops = 3 * total
    else:
        kernel = _pe_add_kernel
        in_specs = [x_spec, pe_spec]
        operands = (x2, pe_tile)
        n_io_arrays = 3
        flops = total

    out2 = pl.pallas_call(
        kernel,
        out_shape=jax.ShapeDtypeStruct((R, C), x.dtype),
        grid=grid,
        in_specs=in_specs,
        out_specs=out_spec,
        compiler_params=pltpu.CompilerParams(
            dimension_semantics=("parallel",)),
        cost_estimate=pl.CostEstimate(
            flops=flops,
            transcendentals=0,
            bytes_accessed=(n_io_arrays - 1) * total * x.dtype.itemsize
            + C * x.dtype.itemsize),
    )(*operands)
    return out2.reshape(x.shape)


if __name__ == "__main__":
    key = jax.random.PRNGKey(0)
    seq_len, batch, d_model = 8, 2, D_MODEL
    x = jax.random.normal(key, (seq_len, batch, d_model), dtype=jnp.float32)

    pe = build_pe_buffer(d_model, MAX_LEN)

    # Eval-mode (dropout = identity): exact, deterministic — check vs pure-JAX ref.
    out_eval = positional_encoding_forward(x, pe, training=False)
    jax.block_until_ready(out_eval)
    ref = x + pe[:batch][None, :, :]
    assert out_eval.shape == x.shape and out_eval.dtype == x.dtype
    assert jnp.allclose(out_eval, ref, atol=1e-6, rtol=1e-6)

    # Training-mode: Bernoulli(1-p) keep-mask with 1/(1-p) scaling (mask drawn
    # with jax.random in the wrapper; applied inside the kernel).
    out_train = positional_encoding_forward(
        x, pe, training=True, rng_key=jax.random.PRNGKey(123))
    jax.block_until_ready(out_train)
    assert out_train.shape == x.shape and out_train.dtype == x.dtype
    scaled = ref / (1.0 - DROPOUT_P)
    ok = jnp.isclose(out_train, 0.0, atol=1e-6) | jnp.isclose(
        out_train, scaled, atol=1e-5, rtol=1e-5)
    assert bool(jnp.all(ok))

    print("KERNEL_OK")
</pallas_src>

<mosaic_0001>
module attributes {stable_mosaic.version = 11 : i64} {
  func.func @_pe_add_kernel(%arg0: i32, %arg1: memref<4x128xf32, #tpu.memory_space<vmem>>, %arg2: memref<1x128xf32, #tpu.memory_space<vmem>>, %arg3: memref<4x128xf32, #tpu.memory_space<vmem>>) attributes {dimension_semantics = [#tpu.dimension_semantics<parallel>], iteration_bounds = array<i64: 1>, scalar_prefetch = 0 : i64, scratch_operands = 0 : i64, tpu.core_type = #tpu.core_type<tc>, window_params = [{transform_indices = @transform_0, window_bounds = array<i64: 4, 128>}, {pipeline_mode = #tpu.pipeline_mode<synchronous>, transform_indices = @transform_1, window_bounds = array<i64: 1, 128>}, {transform_indices = @transform_2, window_bounds = array<i64: 4, 128>}]} {
    %c0 = arith.constant 0 : index
    %c0_0 = arith.constant 0 : index
    %0 = vector.load %arg1[%c0, %c0_0] : memref<4x128xf32, #tpu.memory_space<vmem>>, vector<4x128xf32>
    %c0_1 = arith.constant 0 : index
    %c0_2 = arith.constant 0 : index
    %1 = vector.load %arg2[%c0_1, %c0_2] : memref<1x128xf32, #tpu.memory_space<vmem>>, vector<1x128xf32>
    %2 = vector.broadcast %1 : vector<1x128xf32> to vector<4x128xf32>
    %3 = arith.addf %0, %2 : vector<4x128xf32>
    %c0_3 = arith.constant 0 : index
    %c0_4 = arith.constant 0 : index
    %4 = vector.load %arg3[%c0_3, %c0_4] : memref<4x128xf32, #tpu.memory_space<vmem>>, vector<4x128xf32>
    tpu.vector_store %arg3[%c0_3, %c0_4], %3 {strides = array<i32>} : memref<4x128xf32, #tpu.memory_space<vmem>>, vector<4x128xf32>,
    return
  }
  func.func @transform_0(%arg0: i32) -> (i32, i32) {
    %c0_i32 = arith.constant 0 : i32
    %c0_i32_0 = arith.constant 0 : i32
    return %arg0, %c0_i32 : i32, i32
  }
  func.func @transform_1(%arg0: i32) -> (i32, i32) {
    %c0_i32 = arith.constant 0 : i32
    %c0_i32_0 = arith.constant 0 : i32
    %c0_i32_1 = arith.constant 0 : i32
    return %c0_i32, %c0_i32_0 : i32, i32
  }
  func.func @transform_2(%arg0: i32) -> (i32, i32) {
    %c0_i32 = arith.constant 0 : i32
    %c0_i32_0 = arith.constant 0 : i32
    return %arg0, %c0_i32 : i32, i32
  }
}

</mosaic_0001>

<llo_original>
// kernel: tpu_custom_call.1
$region0: #{tpu_custom_call.1}
  #allocation0 [shape = 'u32[]', space=smem, size = 0x4, offset = 0x4, fixed_abs, tag = 'smem constant byte address 0x4 - core index']
  #allocation1 [shape = 'u32[144,128]{1,0:T(1,128)}', space=vmem, size = 0x12000, scoped, tag = 'internal scratch']
  %s0 = inlined_call_operand.hbm [shape: f32[4,128], index: 0, kind: input, shape index: {}]
  %s1 = inlined_call_operand.vmem [shape: f32[1,128], index: 1, kind: input, shape index: {}]
  %s2 = inlined_call_operand.hbm [shape: f32[4,128], index: 2, kind: output, shape index: {}]
  %s3 = sld [smem:[#allocation0]]
  $region22: #{tpu_custom_call.1} parent=0
    _
  %s5 = ssub.s32 1, %s3
  %s6 = scalar_select 0, %s5, %s3
  $region1: #{tpu_custom_call.1} parent=0
    #allocation2 [shape = 'u8[2048]{0}', space=vmem, size = 0x800, scoped, tag = 'input window, operand 0, single buffered']
    #allocation3 [shape = 's32[1]{0}', space=sflag, size = 0x4, scoped, tag = 'scoped memory for tpu_custom_call.1']
    #allocation4 [shape = 's32[1]{0}', space=sflag, size = 0x4, scoped, tag = 'scoped memory for tpu_custom_call.1']
    #allocation5 [shape = 'u8[2048]{0}', space=vmem, size = 0x800, scoped, tag = 'output window, operand 0, single buffered']
    %7 = vsyncpa [#allocation3], 0
    %8 = vsyncpa [#allocation4], 0
    // Predicated region
    $region2: #{tpu_custom_call.1} parent=1 // pred_check
      _
    $region3: #{tpu_custom_call.1} parent=1 // pred_check_branch
      %10 = sbr.rel (0) target = $region5
    $region4: #{tpu_custom_call.1} parent=1 // pred_region
      %s12 = ssub.s32 64, 64
      %13 = vsyncadd [#allocation3], %s12
      %s15 = sshll.u32 [#allocation2], 4
      %s16 = int_to_ptr.vmem [resolvable:$true] %s15
      %18 = dma.hbm_to_vmem [thread:$0]  %s0, 64, %s16, [#allocation3]
    $region5: #{tpu_custom_call.1} parent=1 // pred_fallthru
      _
    // Predicated region
    $region6: #{tpu_custom_call.1} parent=1 // pred_check
      _
    $region7: #{tpu_custom_call.1} parent=1 // pred_check_branch
      %20 = sbr.rel (0) target = $region9
    $region8: #{tpu_custom_call.1} parent=1 // pred_region
      _
    $region9: #{tpu_custom_call.1} parent=1 // pred_fallthru
      _
    // Predicated region
    $region10: #{tpu_custom_call.1} parent=1 // pred_check
      _
    $region11: #{tpu_custom_call.1} parent=1 // pred_check_branch
      %22 = sbr.rel (0) target = $region13
    $region12: #{tpu_custom_call.1} parent=1 // pred_region
      %23 = dma.done [#allocation3], 64
    $region13: #{tpu_custom_call.1} parent=1 // pred_fallthru
      _
    %v24 = vld [vmem:[#allocation2] sm:$0xf]
    %v25 = vld [vmem:[%s1] sm:$0x1]
    %v27 = vlaneseq
    %v28 = vshrl.u32 %v27, 7
    %v29 = vsub.s32 0, %v28
    %v30 = vrot.slane %v25, %v29
    %v32 = vadd.f32 %v24, %v30
    %33 = vst [vmem:[#allocation5] sm:$0xf] %v32
    // Predicated region
    $region14: #{tpu_custom_call.1} parent=1 // pred_check
      _
    $region15: #{tpu_custom_call.1} parent=1 // pred_check_branch
      %35 = sbr.rel (0) target = $region17
    $region16: #{tpu_custom_call.1} parent=1 // pred_region
      %s37 = ssub.s32 64, 64
      %38 = vsyncadd [#allocation4], %s37
      %s40 = sshll.u32 [#allocation5], 4
      %s41 = int_to_ptr.vmem [resolvable:$true] %s40
      %43 = dma.vmem_to_hbm [thread:$0]  %s41, 64, %s2, [#allocation4]
    $region17: #{tpu_custom_call.1} parent=1 // pred_fallthru
      _
    // Predicated region
    $region18: #{tpu_custom_call.1} parent=1 // pred_check
      _
    $region19: #{tpu_custom_call.1} parent=1 // pred_check_branch
      %45 = sbr.rel (0) target = $region21
    $region20: #{tpu_custom_call.1} parent=1 // pred_region
      %46 = dma.done [#allocation4], 64
    $region21: #{tpu_custom_call.1} parent=1 // pred_fallthru
      _
    %47 = vsyncpa [#allocation3], 1
    %48 = vsyncpa [#allocation4], 1

</llo_original>
